<compile_context>
chip_gen: v7x
topology: tpu7x:2x2x1
jax: 0.10.0
libtpu: 0.0.40
codegen_flags: <defaults>
</compile_context>

<pallas_src>
import jax
import jax.numpy as jnp
import numpy as np
from jax.experimental import pallas as pl
from jax.experimental.pallas import tpu as pltpu

_MIB = 1024 * 1024


def _round_up(x, m):
    return -(-x // m) * m


def _phys_vmem_bytes():
    """Physical VMEM per TensorCore, inferred from device kind (conservative fallback)."""
    try:
        kind = jax.devices()[0].device_kind.lower()
    except Exception:
        kind = ""
    if "v2" in kind or "v3" in kind:
        return 16 * _MIB
    if any(t in kind for t in ("v4", "v5", "v6")):
        return 128 * _MIB
    return 64 * _MIB          # v7x and unknown generations: be conservative


def _pick_batch_tile(B, per_row_bytes, fixed_bytes, budget_bytes):
    """Largest batch tile that fits the VMEM budget, is a multiple of 8 (or the
    whole batch), keeps >=2 grid steps when B >= 16 (v7x has 2 TensorCores),
    and keeps batch padding small (exact divisors of B are found naturally)."""
    avail = max(budget_bytes - fixed_bytes, per_row_bytes)
    tb_cap = min(max(avail // per_row_bytes, 1), B, 1024)
    if B >= 16:                                   # keep >=2 grid steps (megacore)
        tb_cap = min(tb_cap, _round_up(-(-B // 2), 8))
    if tb_cap >= B:
        return B, B                               # single grid step, no padding
    if tb_cap < 8:
        tb_cap = 8                                # floor for (8,128)-aligned blocks
    max_waste = max(8, B // 8)                    # <=~12.5% extra rows from padding
    tb, b_pad = 8, _round_up(B, 8)
    for cand in range((tb_cap // 8) * 8, 7, -8):
        waste = _round_up(B, cand) - B
        if waste <= max_waste:
            tb, b_pad = cand, _round_up(B, cand)
            break
    return tb, b_pad


def _make_cls_head_kernel(*, n_num, n_cat, o_pad, compute_dtype):
    """Build the fused CLSHead kernel for a static (n_num, n_cat) split."""
    cast_h = np.dtype(compute_dtype) != np.dtype(jnp.float32)

    def kernel(x_ref, w1_ref, b1_ref, wn_ref, bn_ref, *rest):
        if n_cat:
            wc_ref, bc_ref, num_ref, cat_ref = rest
        else:
            (num_ref,) = rest

        tb, s_pad, d_in = x_ref.shape
        d_hidden = w1_ref.shape[1]

        # First layer over all (padded) tokens of the tile.  x arrives already
        # in compute_dtype (pre-cast in the wrapper) and s_pad % 8 == 0, so
        # both reshapes below are sublane-aligned (no relayout copies).
        x2 = x_ref[...].reshape(tb * s_pad, d_in)
        h = jnp.dot(x2, w1_ref[...], preferred_element_type=jnp.float32)
        h = jnp.maximum(h + b1_ref[...], 0.0)                 # relu(first(x)), f32
        h3 = h.reshape(tb, s_pad, d_hidden)

        # Numeric head (d_hidden -> 1): VPU multiply + cross-lane reduce over
        # every token; the wrapper slices tokens [1, 1+n_num).  Scalar bias
        # lives in SMEM.  (Output bytes are negligible vs the x stream.)
        wn = wn_ref[...].reshape(1, 1, d_hidden)
        num_ref[...] = (jnp.sum(h3 * wn, axis=-1)
                        + bn_ref[0, 0]).astype(num_ref.dtype)

        if n_cat:
            # All category heads as ONE wide MXU matmul against the packed
            # (d_hidden, n_cat*o_pad) weight while h is still VMEM-resident.
            # Using all tb*s_pad rows keeps the LHS layout untouched; per head
            # only a static slice + bias + lane-dense (tb, o_pad) store remain.
            hc = h.astype(compute_dtype) if cast_h else h
            big = jnp.dot(hc, wc_ref[...], preferred_element_type=jnp.float32)
            big3 = big.reshape(tb, s_pad, n_cat * o_pad)
            for ci in range(n_cat):
                tok = 1 + n_num + ci
                c0 = ci * o_pad
                logits = big3[:, tok, c0:c0 + o_pad] + bc_ref[:, c0:c0 + o_pad]
                cat_ref[ci, :, :] = logits.astype(cat_ref.dtype)

    return kernel


def cls_head_forward(x, params, *, n_num_features, category_sizes,
                     compute_dtype=jnp.float32):
    B, S, d_in = x.shape
    n_cat = len(category_sizes) if category_sizes else 0
    n_num = S - 1 - n_cat
    if n_num != n_num_features:
        raise ValueError(
            f"n_num_features={n_num_features} inconsistent with input: "
            f"S - 1 - n_cat = {S} - 1 - {n_cat} = {n_num}")

    cdt = np.dtype(compute_dtype)
    cbytes = cdt.itemsize

    w1 = params["w1"].astype(cdt)                          # (d_in, d_hidden)
    d_hidden = w1.shape[1]
    b1 = params["b1"].reshape(1, d_hidden).astype(jnp.float32)
    wn = params["w_num"].reshape(1, d_hidden).astype(jnp.float32)
    bn = params["b_num"].reshape(1, 1).astype(jnp.float32)   # SMEM scalar

    if n_cat:
        wc = params["w_cat"].astype(cdt)                   # (d_hidden, n_cat*o_pad)
        bc = params["b_cat"].reshape(1, -1).astype(jnp.float32)
        w_total = wc.shape[1]
        o_pad = w_total // n_cat
    else:
        wc = bc = None
        w_total = o_pad = 0

    # --- generation-aware tiling ------------------------------------------
    s_pad = _round_up(S, 8)
    vmem_limit = int(min((_phys_vmem_bytes() * 3) // 4, 100 * _MIB))
    per_row = (2 * s_pad * d_in * cbytes           # x tile (double buffered)
               + s_pad * d_hidden * 4              # h (f32)
               + s_pad * d_hidden * cbytes         # h cast for the cat matmul
               + s_pad * w_total * 4               # fused category logits (f32)
               + 3 * s_pad * 4                     # num result + 2 output buffers
               + 2 * n_cat * o_pad * 4)            # cat output blocks (x2)
    per_row = (per_row * 5) // 4                   # slack for fusion temporaries
    fixed = 2 * (d_in * d_hidden * cbytes + 2 * d_hidden * 4
                 + d_hidden * w_total * cbytes + w_total * 4)
    tb, b_pad = _pick_batch_tile(B, per_row, fixed, (vmem_limit * 85) // 100)
    grid_b = b_pad // tb

    # --- x prep: at most ONE fused pad+cast pass over x ---------------------
    x_prep = x
    if b_pad != B or s_pad != S:
        x_prep = jnp.pad(x, ((0, b_pad - B), (0, s_pad - S), (0, 0)))
    if x_prep.dtype != cdt:
        x_prep = x_prep.astype(cdt)

    in_specs = [
        pl.BlockSpec((tb, s_pad, d_in), lambda i: (i, 0, 0)),       # x tile
        pl.BlockSpec((d_in, d_hidden), lambda i: (0, 0)),           # W1 (resident)
        pl.BlockSpec((1, d_hidden), lambda i: (0, 0)),              # b1
        pl.BlockSpec((1, d_hidden), lambda i: (0, 0)),              # w_num row
        pl.BlockSpec(memory_space=pltpu.MemorySpace.SMEM),          # b_num scalar
    ]
    args = [x_prep, w1, b1, wn, bn]

    num_shape = jax.ShapeDtypeStruct((b_pad, s_pad), jnp.float32)
    num_spec = pl.BlockSpec((tb, s_pad), lambda i: (i, 0))
    if n_cat:
        in_specs += [pl.BlockSpec((d_hidden, w_total), lambda i: (0, 0)),
                     pl.BlockSpec((1, w_total), lambda i: (0, 0))]
        args += [wc, bc]
        out_shape = (num_shape,
                     jax.ShapeDtypeStruct((n_cat, b_pad, o_pad), jnp.float32))
        out_specs = (num_spec,
                     pl.BlockSpec((n_cat, tb, o_pad), lambda i: (0, i, 0)))
    else:
        out_shape, out_specs = num_shape, num_spec

    kernel = _make_cls_head_kernel(n_num=n_num, n_cat=n_cat, o_pad=o_pad,
                                   compute_dtype=cdt)

    outs = pl.pallas_call(
        kernel,
        grid=(grid_b,),
        in_specs=in_specs,
        out_specs=out_specs,
        out_shape=out_shape,
        compiler_params=pltpu.CompilerParams(
            dimension_semantics=("parallel",),     # megacore on v7x, no-op elsewhere
            vmem_limit_bytes=vmem_limit,
        ),
    )(*args)

    if n_cat:
        num_full, cat_full = outs
    else:
        num_full, cat_full = outs, None

    # Mirrors torch's .squeeze(): collapses ALL size-1 dims.
    num_out = jnp.squeeze(num_full[:B, 1:1 + n_num])
    cat_out = None
    if n_cat:
        cat_out = [cat_full[i, :B, :o] for i, o in enumerate(category_sizes)]
    return num_out, cat_out


def ref_forward(x, params, *, n_num_features, category_sizes):
    """Pure-JAX reference mirroring the PyTorch forward exactly."""
    xb = x[:, 1:, :]
    h = jax.nn.relu(xb @ params["w1"] + params["b1"])
    cat_out = None
    if category_sizes:
        n_cat = len(category_sizes)
        o_pad = params["w_cat"].shape[1] // n_cat
        x_cat = h[:, -n_cat:, :]
        cat_out = [
            x_cat[:, i] @ params["w_cat"][:, i * o_pad:i * o_pad + o]
            + params["b_cat"][i * o_pad:i * o_pad + o]
            for i, o in enumerate(category_sizes)
        ]
        x_num = h[:, :-n_cat, :]
    else:
        x_num = h
    num_out = jnp.squeeze(x_num @ params["w_num"] + params["b_num"].reshape(()))
    return num_out, cat_out


def init_params(key, d_in, d_hidden, category_sizes):
    """Init mimicking nn.Linear's U(-1/sqrt(fan_in), 1/sqrt(fan_in)).

    Category-head weights are stored PACKED along the output axis, each head
    zero-padded to a 128-multiple width (lane-aligned, single wide MXU RHS);
    true sizes are sliced back in the wrapper.
    """
    ks = jax.random.split(key, 5)
    k1 = 1.0 / np.sqrt(d_in)
    kh = 1.0 / np.sqrt(d_hidden)
    params = {
        "w1": jax.random.uniform(ks[0], (d_in, d_hidden), jnp.float32, -k1, k1),
        "b1": jax.random.uniform(ks[1], (d_hidden,), jnp.float32, -k1, k1),
        "w_num": jax.random.uniform(ks[2], (d_hidden, 1), jnp.float32, -kh, kh),
        "b_num": jax.random.uniform(ks[3], (1,), jnp.float32, -kh, kh),
    }
    if category_sizes:
        n_cat = len(category_sizes)
        o_pad = _round_up(max(category_sizes), 128)
        wc = np.zeros((d_hidden, n_cat * o_pad), np.float32)
        bc = np.zeros((n_cat * o_pad,), np.float32)
        kk = jax.random.split(ks[4], 2 * n_cat)
        for i, o in enumerate(category_sizes):
            wc[:, i * o_pad:i * o_pad + o] = np.asarray(
                jax.random.uniform(kk[2 * i], (d_hidden, o), jnp.float32, -kh, kh))
            bc[i * o_pad:i * o_pad + o] = np.asarray(
                jax.random.uniform(kk[2 * i + 1], (o,), jnp.float32, -kh, kh))
        params["w_cat"] = jnp.asarray(wc)
        params["b_cat"] = jnp.asarray(bc)
    return params


if __name__ == "__main__":
    key = jax.random.PRNGKey(0)

    # ---- config 1: numeric + categorical heads (f32 and bf16 paths) -------
    B, d_in, d_hidden = 2, 32, 32
    n_num_features, category_sizes = 5, [3, 7]
    S = 1 + n_num_features + len(category_sizes)          # 8
    kx, kp = jax.random.split(key)
    x = jax.random.normal(kx, (B, S, d_in), jnp.float32)
    params = init_params(kp, d_in, d_hidden, category_sizes)

    num_r, cat_r = ref_forward(x, params, n_num_features=n_num_features,
                               category_sizes=category_sizes)
    num_o, cat_o = cls_head_forward(x, params, n_num_features=n_num_features,
                                    category_sizes=category_sizes)
    num_o = jax.block_until_ready(num_o)
    assert num_o.shape == (B, n_num_features), num_o.shape
    np.testing.assert_allclose(np.asarray(num_o), np.asarray(num_r),
                               rtol=1e-4, atol=1e-4)
    for c, r, o in zip(cat_o, cat_r, category_sizes):
        c = jax.block_until_ready(c)
        assert c.shape == (B, o), c.shape
        np.testing.assert_allclose(np.asarray(c), np.asarray(r),
                                   rtol=1e-4, atol=1e-4)

    # bf16 operands (f32 accumulation): x is pre-cast in the wrapper so the
    # per-tile HBM DMA moves half the bytes.
    num_b, cat_b = cls_head_forward(x, params, n_num_features=n_num_features,
                                    category_sizes=category_sizes,
                                    compute_dtype=jnp.bfloat16)
    num_b = jax.block_until_ready(num_b)
    np.testing.assert_allclose(np.asarray(num_b), np.asarray(num_r),
                               rtol=1e-1, atol=1e-1)
    for c, r in zip(cat_b, cat_r):
        np.testing.assert_allclose(np.asarray(jax.block_until_ready(c)),
                                   np.asarray(r), rtol=1e-1, atol=1e-1)

    # ---- config 2: no categorical heads ------------------------------------
    B2, n_num2 = 4, 7
    S2 = 1 + n_num2
    x2 = jax.random.normal(jax.random.PRNGKey(1), (B2, S2, d_in), jnp.float32)
    p2 = init_params(jax.random.PRNGKey(2), d_in, d_hidden, None)
    n2, c2 = cls_head_forward(x2, p2, n_num_features=n_num2, category_sizes=None)
    n2 = jax.block_until_ready(n2)
    n2_r, _ = ref_forward(x2, p2, n_num_features=n_num2, category_sizes=None)
    assert c2 is None and n2.shape == (B2, n_num2), n2.shape
    np.testing.assert_allclose(np.asarray(n2), np.asarray(n2_r),
                               rtol=1e-4, atol=1e-4)

    # ---- config 3: S % 8 != 0, multi-step grid, padded batch, wide cat head
    B3, d_in3, d_h3 = 20, 16, 64
    n_num3, cats3 = 6, [5, 130, 3]
    S3 = 1 + n_num3 + len(cats3)                           # 10 -> token-padded to 16
    x3 = jax.random.normal(jax.random.PRNGKey(3), (B3, S3, d_in3), jnp.float32)
    p3 = init_params(jax.random.PRNGKey(4), d_in3, d_h3, cats3)
    n3, c3 = cls_head_forward(x3, p3, n_num_features=n_num3, category_sizes=cats3)
    n3 = jax.block_until_ready(n3)
    n3_r, c3_r = ref_forward(x3, p3, n_num_features=n_num3, category_sizes=cats3)
    assert n3.shape == (B3, n_num3), n3.shape
    np.testing.assert_allclose(np.asarray(n3), np.asarray(n3_r),
                               rtol=1e-3, atol=1e-3)
    for c, r, o in zip(c3, c3_r, cats3):
        c = jax.block_until_ready(c)
        assert c.shape == (B3, o), c.shape
        np.testing.assert_allclose(np.asarray(c), np.asarray(r),
                                   rtol=1e-3, atol=1e-3)

    print("KERNEL_OK")
</pallas_src>

<mosaic_0001>
module attributes {stable_mosaic.version = 11 : i64} {
  func.func @kernel(%arg0: i32, %arg1: memref<2x8x32xf32, #tpu.memory_space<vmem>>, %arg2: memref<32x32xf32, #tpu.memory_space<vmem>>, %arg3: memref<1x32xf32, #tpu.memory_space<vmem>>, %arg4: memref<1x32xf32, #tpu.memory_space<vmem>>, %arg5: memref<1x1xf32, #tpu.memory_space<smem>>, %arg6: memref<32x256xf32, #tpu.memory_space<vmem>>, %arg7: memref<1x256xf32, #tpu.memory_space<vmem>>, %arg8: memref<2x8xf32, #tpu.memory_space<vmem>>, %arg9: memref<2x2x128xf32, #tpu.memory_space<vmem>>) attributes {dimension_semantics = [#tpu.dimension_semantics<parallel>], iteration_bounds = array<i64: 1>, scalar_prefetch = 0 : i64, scratch_operands = 0 : i64, tpu.core_type = #tpu.core_type<tc>, window_params = [{transform_indices = @transform_0, window_bounds = array<i64: 2, 8, 32>}, {pipeline_mode = #tpu.pipeline_mode<synchronous>, transform_indices = @transform_1, window_bounds = array<i64: 32, 32>}, {pipeline_mode = #tpu.pipeline_mode<synchronous>, transform_indices = @transform_2, window_bounds = array<i64: 1, 32>}, {pipeline_mode = #tpu.pipeline_mode<synchronous>, transform_indices = @transform_3, window_bounds = array<i64: 1, 32>}, {transform_indices = @transform_4, window_bounds = array<i64: 1, 1>}, {pipeline_mode = #tpu.pipeline_mode<synchronous>, transform_indices = @transform_5, window_bounds = array<i64: 32, 256>}, {pipeline_mode = #tpu.pipeline_mode<synchronous>, transform_indices = @transform_6, window_bounds = array<i64: 1, 256>}, {transform_indices = @transform_7, window_bounds = array<i64: 2, 8>}, {transform_indices = @transform_8, window_bounds = array<i64: 2, 2, 128>}]} {
    %c0 = arith.constant 0 : index
    %c0_0 = arith.constant 0 : index
    %c0_1 = arith.constant 0 : index
    %0 = vector.load %arg1[%c0, %c0_0, %c0_1] : memref<2x8x32xf32, #tpu.memory_space<vmem>>, vector<2x8x32xf32>
    %1 = vector.shape_cast %0 : vector<2x8x32xf32> to vector<16x32xf32>
    %c0_2 = arith.constant 0 : index
    %c0_3 = arith.constant 0 : index
    %2 = vector.load %arg2[%c0_2, %c0_3] : memref<32x32xf32, #tpu.memory_space<vmem>>, vector<32x32xf32>
    %cst = arith.constant dense<0.000000e+00> : vector<16x32xf32>
    %3 = tpu.matmul %1, %2, %cst {dimension_numbers = #tpu.dot_dimension_numbers<[1], [0], [0], [1], [0, 0, 1, 1], [], []>} : vector<16x32xf32>, vector<32x32xf32>, vector<16x32xf32> -> vector<16x32xf32>
    %c0_4 = arith.constant 0 : index
    %c0_5 = arith.constant 0 : index
    %4 = vector.load %arg3[%c0_4, %c0_5] : memref<1x32xf32, #tpu.memory_space<vmem>>, vector<1x32xf32>
    %5 = vector.broadcast %4 : vector<1x32xf32> to vector<16x32xf32>
    %6 = arith.addf %3, %5 : vector<16x32xf32>
    %cst_6 = arith.constant 0.000000e+00 : f32
    %7 = vector.broadcast %cst_6 : f32 to vector<16x32xf32>
    %8 = arith.maximumf %6, %7 : vector<16x32xf32>
    %9 = vector.shape_cast %8 : vector<16x32xf32> to vector<2x8x32xf32>
    %c0_7 = arith.constant 0 : index
    %c0_8 = arith.constant 0 : index
    %10 = vector.load %arg4[%c0_7, %c0_8] : memref<1x32xf32, #tpu.memory_space<vmem>>, vector<1x32xf32>
    %11 = vector.shape_cast %10 : vector<1x32xf32> to vector<1x1x32xf32>
    %12 = vector.broadcast %11 : vector<1x1x32xf32> to vector<2x8x32xf32>
    %13 = arith.mulf %9, %12 : vector<2x8x32xf32>
    %cst_9 = arith.constant dense<0.000000e+00> : vector<2x8xf32>
    %14 = vector.multi_reduction <add>, %13, %cst_9 [2] : vector<2x8x32xf32> to vector<2x8xf32>
    %c0_10 = arith.constant 0 : index
    %c0_11 = arith.constant 0 : index
    %15 = memref.load %arg5[%c0_10, %c0_11] : memref<1x1xf32, #tpu.memory_space<smem>>
    %16 = vector.broadcast %15 : f32 to vector<2x8xf32>
    %17 = arith.addf %14, %16 : vector<2x8xf32>
    %c0_12 = arith.constant 0 : index
    %c0_13 = arith.constant 0 : index
    %18 = vector.load %arg8[%c0_12, %c0_13] : memref<2x8xf32, #tpu.memory_space<vmem>>, vector<2x8xf32>
    tpu.vector_store %arg8[%c0_12, %c0_13], %17 {strides = array<i32>} : memref<2x8xf32, #tpu.memory_space<vmem>>, vector<2x8xf32>,
    %c0_14 = arith.constant 0 : index
    %c0_15 = arith.constant 0 : index
    %19 = vector.load %arg6[%c0_14, %c0_15] : memref<32x256xf32, #tpu.memory_space<vmem>>, vector<32x256xf32>
    %cst_16 = arith.constant dense<0.000000e+00> : vector<16x256xf32>
    %20 = tpu.matmul %8, %19, %cst_16 {dimension_numbers = #tpu.dot_dimension_numbers<[1], [0], [0], [1], [0, 0, 1, 1], [], []>} : vector<16x32xf32>, vector<32x256xf32>, vector<16x256xf32> -> vector<16x256xf32>
    %21 = vector.shape_cast %20 : vector<16x256xf32> to vector<2x8x256xf32>
    %22 = vector.extract_strided_slice %21 {offsets = [0, 6, 0], sizes = [2, 1, 128], strides = [1, 1, 1]} : vector<2x8x256xf32> to vector<2x1x128xf32>
    %23 = vector.shape_cast %22 : vector<2x1x128xf32> to vector<2x128xf32>
    %c0_17 = arith.constant 0 : index
    %c0_18 = arith.constant 0 : index
    %24 = vector.load %arg7[%c0_17, %c0_18] : memref<1x256xf32, #tpu.memory_space<vmem>>, vector<1x128xf32>
    %25 = vector.broadcast %24 : vector<1x128xf32> to vector<2x128xf32>
    %26 = arith.addf %23, %25 : vector<2x128xf32>
    %c0_19 = arith.constant 0 : index
    %c0_20 = arith.constant 0 : index
    %c0_21 = arith.constant 0 : index
    %27 = vector.load %arg9[%c0_19, %c0_20, %c0_21] : memref<2x2x128xf32, #tpu.memory_space<vmem>>, vector<1x2x128xf32>
    %28 = vector.shape_cast %27 : vector<1x2x128xf32> to vector<2x128xf32>
    %29 = vector.shape_cast %26 : vector<2x128xf32> to vector<1x2x128xf32>
    tpu.vector_store %arg9[%c0_19, %c0_20, %c0_21], %29 {strides = array<i32>} : memref<2x2x128xf32, #tpu.memory_space<vmem>>, vector<1x2x128xf32>,
    %30 = vector.extract_strided_slice %21 {offsets = [0, 7, 128], sizes = [2, 1, 128], strides = [1, 1, 1]} : vector<2x8x256xf32> to vector<2x1x128xf32>
    %31 = vector.shape_cast %30 : vector<2x1x128xf32> to vector<2x128xf32>
    %c0_22 = arith.constant 0 : index
    %c128 = arith.constant 128 : index
    %32 = vector.load %arg7[%c0_22, %c128] : memref<1x256xf32, #tpu.memory_space<vmem>>, vector<1x128xf32>
    %33 = vector.broadcast %32 : vector<1x128xf32> to vector<2x128xf32>
    %34 = arith.addf %31, %33 : vector<2x128xf32>
    %c1 = arith.constant 1 : index
    %c0_23 = arith.constant 0 : index
    %c0_24 = arith.constant 0 : index
    %35 = vector.load %arg9[%c1, %c0_23, %c0_24] : memref<2x2x128xf32, #tpu.memory_space<vmem>>, vector<1x2x128xf32>
    %36 = vector.shape_cast %35 : vector<1x2x128xf32> to vector<2x128xf32>
    %37 = vector.shape_cast %34 : vector<2x128xf32> to vector<1x2x128xf32>
    tpu.vector_store %arg9[%c1, %c0_23, %c0_24], %37 {strides = array<i32>} : memref<2x2x128xf32, #tpu.memory_space<vmem>>, vector<1x2x128xf32>,
    return
  }
  func.func @transform_0(%arg0: i32) -> (i32, i32, i32) {
    %c0_i32 = arith.constant 0 : i32
    %c0_i32_0 = arith.constant 0 : i32
    %c0_i32_1 = arith.constant 0 : i32
    return %arg0, %c0_i32, %c0_i32_0 : i32, i32, i32
  }
  func.func @transform_1(%arg0: i32) -> (i32, i32) {
    %c0_i32 = arith.constant 0 : i32
    %c0_i32_0 = arith.constant 0 : i32
    %c0_i32_1 = arith.constant 0 : i32
    return %c0_i32, %c0_i32_0 : i32, i32
  }
  func.func @transform_2(%arg0: i32) -> (i32, i32) {
    %c0_i32 = arith.constant 0 : i32
    %c0_i32_0 = arith.constant 0 : i32
    %c0_i32_1 = arith.constant 0 : i32
    return %c0_i32, %c0_i32_0 : i32, i32
  }
  func.func @transform_3(%arg0: i32) -> (i32, i32) {
    %c0_i32 = arith.constant 0 : i32
    %c0_i32_0 = arith.constant 0 : i32
    %c0_i32_1 = arith.constant 0 : i32
    return %c0_i32, %c0_i32_0 : i32, i32
  }
  func.func @transform_4(%arg0: i32) -> (i32, i32) {
    %c0_i32 = arith.constant 0 : i32
    %c0_i32_0 = arith.constant 0 : i32
    %c0_i32_1 = arith.constant 0 : i32
    return %c0_i32, %c0_i32_0 : i32, i32
  }
  func.func @transform_5(%arg0: i32) -> (i32, i32) {
    %c0_i32 = arith.constant 0 : i32
    %c0_i32_0 = arith.constant 0 : i32
    %c0_i32_1 = arith.constant 0 : i32
    return %c0_i32, %c0_i32_0 : i32, i32
  }
  func.func @transform_6(%arg0: i32) -> (i32, i32) {
    %c0_i32 = arith.constant 0 : i32
    %c0_i32_0 = arith.constant 0 : i32
    %c0_i32_1 = arith.constant 0 : i32
    return %c0_i32, %c0_i32_0 : i32, i32
  }
  func.func @transform_7(%arg0: i32) -> (i32, i32) {
    %c0_i32 = arith.constant 0 : i32
    %c0_i32_0 = arith.constant 0 : i32
    return %arg0, %c0_i32 : i32, i32
  }
  func.func @transform_8(%arg0: i32) -> (i32, i32, i32) {
    %c0_i32 = arith.constant 0 : i32
    %c0_i32_0 = arith.constant 0 : i32
    %c0_i32_1 = arith.constant 0 : i32
    return %c0_i32, %arg0, %c0_i32_0 : i32, i32, i32
  }
}

</mosaic_0001>

<llo_original>
// kernel: tpu_custom_call.1
$region0: #{tpu_custom_call.1}
  #allocation0 [shape = 'u32[]', space=smem, size = 0x4, offset = 0x4, fixed_abs, tag = 'smem constant byte address 0x4 - core index']
  #allocation1 [shape = 'u32[144,128]{1,0:T(1,128)}', space=vmem, size = 0x12000, scoped, tag = 'internal scratch']
  #allocation2 [shape = 'f32[1,1]{1,0:T(1,128)S(6)}', space=smem, size = 0x200, scoped, tag = 'scoped memory for tpu_custom_call.1']
  %s0 = inlined_call_operand.hbm [shape: f32[2,8,32], index: 0, kind: input, shape index: {}]
  %s1 = inlined_call_operand.hbm [shape: f32[32,32], index: 1, kind: input, shape index: {}]
  %s2 = inlined_call_operand.vmem [shape: f32[1,32], index: 2, kind: input, shape index: {}]
  %s3 = inlined_call_operand.vmem [shape: f32[1,32], index: 3, kind: input, shape index: {}]
  %s4 = inlined_call_operand.<no memory space> [shape: f32[1,1], index: 4, kind: input, shape index: {}]
  %s5 = inlined_call_operand.hbm [shape: f32[32,256], index: 5, kind: input, shape index: {}]
  %s6 = inlined_call_operand.vmem [shape: f32[1,256], index: 6, kind: input, shape index: {}]
  %s7 = inlined_call_operand.hbm [shape: f32[2,8], index: 7, kind: output, shape index: {0}]
  %s8 = inlined_call_operand.hbm [shape: f32[2,2,128], index: 8, kind: output, shape index: {1}]
  %9 = xla_tuple %s7, %s8
  %s10 = sld [smem:[#allocation0]]
  $region58: #{tpu_custom_call.1} parent=0
    _
  %s12 = ssub.s32 1, %s10
  %s13 = scalar_select 0, %s12, %s10
  %14 = sst [smem:[#allocation2]] %s4
  $region1: #{tpu_custom_call.1} parent=0
    #allocation3 [shape = 'u8[8192]{0}', space=vmem, size = 0x2000, scoped, tag = 'input window, operand 0, single buffered']
    #allocation4 [shape = 's32[1]{0}', space=sflag, size = 0x4, scoped, tag = 'scoped memory for tpu_custom_call.1']
    #allocation5 [shape = 's32[1]{0}', space=sflag, size = 0x4, scoped, tag = 'scoped memory for tpu_custom_call.1']
    #allocation6 [shape = 'u8[16384]{0}', space=vmem, size = 0x4000, scoped, tag = 'input window, operand 1, single buffered']
    #allocation7 [shape = 's32[1]{0}', space=sflag, size = 0x4, scoped, tag = 'scoped memory for tpu_custom_call.1']
    #allocation8 [shape = 'u8[32768]{0}', space=vmem, size = 0x8000, scoped, tag = 'input window, operand 5, single buffered']
    #allocation9 [shape = 'u8[1024]{0}', space=vmem, size = 0x400, scoped, tag = 'output window, operand 0, single buffered']
    #allocation10 [shape = 'u8[2048]{0}', space=vmem, size = 0x800, scoped, tag = 'output window, operand 1, single buffered']
    #allocation11 [shape = 's32[1]{0}', space=sflag, size = 0x4, scoped, tag = 'scoped memory for tpu_custom_call.1']
    %15 = vsyncpa [#allocation4], 0
    %16 = vsyncpa [#allocation7], 0
    %17 = vsyncpa [#allocation5], 0
    %18 = vsyncpa [#allocation11], 0
    // Predicated region
    $region2: #{tpu_custom_call.1} parent=1 // pred_check
      _
    $region3: #{tpu_custom_call.1} parent=1 // pred_check_branch
      %20 = sbr.rel (0) target = $region5
    $region4: #{tpu_custom_call.1} parent=1 // pred_region
      %s22 = ssub.s32 256, 256
      %23 = vsyncadd [#allocation4], %s22
      %s24 = sshll.u32 [#allocation3], 4
      %s25 = int_to_ptr.vmem [resolvable:$true] %s24
      %30 = dma.hbm_to_vmem [thread:$0]  %s0, 256, %s25, [#allocation4], 128, 128, 8
    $region5: #{tpu_custom_call.1} parent=1 // pred_fallthru
      _
    // Predicated region
    $region6: #{tpu_custom_call.1} parent=1 // pred_check
      _
    $region7: #{tpu_custom_call.1} parent=1 // pred_check_branch
      %32 = sbr.rel (0) target = $region9
    $region8: #{tpu_custom_call.1} parent=1 // pred_region
      %s34 = ssub.s32 512, 512
      %35 = vsyncadd [#allocation7], %s34
      %s36 = sshll.u32 [#allocation6], 4
      %s37 = int_to_ptr.vmem [resolvable:$true] %s36
      %42 = dma.hbm_to_vmem [thread:$0]  %s1, 512, %s37, [#allocation7], 128, 128, 8
    $region9: #{tpu_custom_call.1} parent=1 // pred_fallthru
      _
    // Predicated region
    $region10: #{tpu_custom_call.1} parent=1 // pred_check
      _
    $region11: #{tpu_custom_call.1} parent=1 // pred_check_branch
      %44 = sbr.rel (0) target = $region13
    $region12: #{tpu_custom_call.1} parent=1 // pred_region
      _
    $region13: #{tpu_custom_call.1} parent=1 // pred_fallthru
      _
    // Predicated region
    $region14: #{tpu_custom_call.1} parent=1 // pred_check
      _
    $region15: #{tpu_custom_call.1} parent=1 // pred_check_branch
      %46 = sbr.rel (0) target = $region17
    $region16: #{tpu_custom_call.1} parent=1 // pred_region
      _
    $region17: #{tpu_custom_call.1} parent=1 // pred_fallthru
      _
    // Predicated region
    $region18: #{tpu_custom_call.1} parent=1 // pred_check
      _
    $region19: #{tpu_custom_call.1} parent=1 // pred_check_branch
      %48 = sbr.rel (0) target = $region21
    $region20: #{tpu_custom_call.1} parent=1 // pred_region
      _
    $region21: #{tpu_custom_call.1} parent=1 // pred_fallthru
      _
    // Predicated region
    $region22: #{tpu_custom_call.1} parent=1 // pred_check
      _
    $region23: #{tpu_custom_call.1} parent=1 // pred_check_branch
      %50 = sbr.rel (0) target = $region25
    $region24: #{tpu_custom_call.1} parent=1 // pred_region
      %s52 = ssub.s32 1024, 1024
      %53 = vsyncadd [#allocation7], %s52
      %s54 = sshll.u32 [#allocation8], 4
      %s55 = int_to_ptr.vmem [resolvable:$true] %s54
      %60 = dma.hbm_to_vmem [thread:$0]  %s5, 1024, %s55, [#allocation7], 256, 256, 16
    $region25: #{tpu_custom_call.1} parent=1 // pred_fallthru
      _
    // Predicated region
    $region26: #{tpu_custom_call.1} parent=1 // pred_check
      _
    $region27: #{tpu_custom_call.1} parent=1 // pred_check_branch
      %62 = sbr.rel (0) target = $region29
    $region28: #{tpu_custom_call.1} parent=1 // pred_region
      _
    $region29: #{tpu_custom_call.1} parent=1 // pred_fallthru
      _
    // Predicated region
    $region30: #{tpu_custom_call.1} parent=1 // pred_check
      _
    $region31: #{tpu_custom_call.1} parent=1 // pred_check_branch
      %64 = sbr.rel (0) target = $region33
    $region32: #{tpu_custom_call.1} parent=1 // pred_region
      %65 = dma.done [#allocation4], 256
    $region33: #{tpu_custom_call.1} parent=1 // pred_fallthru
      _
    // Predicated region
    $region34: #{tpu_custom_call.1} parent=1 // pred_check
      _
    $region35: #{tpu_custom_call.1} parent=1 // pred_check_branch
      %67 = sbr.rel (0) target = $region37
    $region36: #{tpu_custom_call.1} parent=1 // pred_region
      %68 = dma.done [#allocation7], 512
    $region37: #{tpu_custom_call.1} parent=1 // pred_fallthru
      _
    // Predicated region
    $region38: #{tpu_custom_call.1} parent=1 // pred_check
      _
    $region39: #{tpu_custom_call.1} parent=1 // pred_check_branch
      %70 = sbr.rel (0) target = $region41
    $region40: #{tpu_custom_call.1} parent=1 // pred_region
      %71 = dma.done [#allocation7], 1024
    $region41: #{tpu_custom_call.1} parent=1 // pred_fallthru
      _
    %v72 = vld [vmem:[#allocation3] sm:$0xff]
    %v73 = vld [vmem:[#allocation3 + $0x8] sm:$0xff]
    %v74 = vld [vmem:[#allocation6] sm:$0xff]
    %v75 = vld [vmem:[#allocation6 + $0x8] sm:$0xff]
    %v76 = vld [vmem:[#allocation6 + $0x10] sm:$0xff]
    %v77 = vld [vmem:[#allocation6 + $0x18] sm:$0xff]
    %v78 = vld [vmem:[%s2] sm:$0x1]
    %v80 = vlaneseq
    %v81 = vshrl.u32 %v80, 7
    %v82 = vsub.s32 0, %v81
    %v83 = vrot.slane %v78, %v82
    %vm85 = vcmask 261120
    %v87 = vsel %vm85, %v72, 0
    %v90 = vsel %vm85, %v73, 0
    %92 = vmatprep.subr.mxu0 0.0
    %93 = vmatpush1.msra.mxu0 %v74
    %94 = vmatprep.subr.mxu0 0.0
    %95 = vmatpush1.msra.mxu0 %v75
    %96 = vmatprep.subr.mxu0 0.0
    %97 = vmatpush1.msra.mxu0 %v76
    %98 = vmatprep.subr.mxu0 0.0
    %99 = vmatpush1.msra.mxu0 %v77
    %100 = vmatprep.subr.mxu0 0.0
    %101 = vmatpush1.msra.mxu0 0.0
    %102 = vmatprep.subr.mxu0 0.0
    %103 = vmatpush1.msra.mxu0 0.0
    %104 = vmatprep.subr.mxu0 0.0
    %105 = vmatpush1.msra.mxu0 0.0
    %106 = vmatprep.subr.mxu0 0.0
    %107 = vmatpush1.msra.mxu0 0.0
    %108 = vmatprep.subr.mxu0 0.0
    %109 = vmatpush1.msra.mxu0 0.0
    %110 = vmatprep.subr.mxu0 0.0
    %111 = vmatpush1.msra.mxu0 0.0
    %112 = vmatprep.subr.mxu0 0.0
    %113 = vmatpush1.msra.mxu0 0.0
    %114 = vmatprep.subr.mxu0 0.0
    %115 = vmatpush1.msra.mxu0 0.0
    %116 = vmatprep.subr.mxu0 0.0
    %117 = vmatpush1.msra.mxu0 0.0
    %118 = vmatprep.subr.mxu0 0.0
    %119 = vmatpush1.msra.mxu0 0.0
    %120 = vmatprep.subr.mxu0 0.0
    %121 = vmatpush1.msra.mxu0 0.0
    %122 = vmatprep.subr.mxu0 0.0
    %123 = vmatpush1.msra.mxu0 0.0
    %124 = vmatprep.subr.mxu0 0.0
    %125 = vmatpush1.msra.mxu0 0.0
    %126 = vmatprep.subr.mxu0 0.0
    %127 = vmatpush1.msra.mxu0 0.0
    %128 = vmatprep.subr.mxu0 0.0
    %129 = vmatpush1.msra.mxu0 0.0
    %130 = vmatprep.subr.mxu0 0.0
    %131 = vmatpush1.msra.mxu0 0.0
    %132 = vmatprep.subr.mxu0 0.0
    %133 = vmatpush1.msra.mxu0 0.0
    %134 = vmatprep.subr.mxu0 0.0
    %135 = vmatpush1.msra.mxu0 0.0
    %136 = vmatprep.subr.mxu0 0.0
    %137 = vmatpush1.msra.mxu0 0.0
    %138 = vmatprep.subr.mxu0 0.0
    %139 = vmatpush1.msra.mxu0 0.0
    %140 = vmatprep.subr.mxu0 0.0
    %141 = vmatpush1.msra.mxu0 0.0
    %142 = vmatprep.subr.mxu0 0.0
    %143 = vmatpush1.msra.mxu0 0.0
    %144 = vmatprep.subr.mxu0 0.0
    %145 = vmatpush1.msra.mxu0 0.0
    %146 = vmatprep.subr.mxu0 0.0
    %147 = vmatpush1.msra.mxu0 0.0
    %148 = vmatprep.subr.mxu0 0.0
    %149 = vmatpush1.msra.mxu0 0.0
    %150 = vmatprep.subr.mxu0 0.0
    %151 = vmatpush1.msra.mxu0 0.0
    %152 = vmatprep.subr.mxu0 0.0
    %153 = vmatpush1.msra.mxu0 0.0
    %154 = vmatprep.subr.mxu0 0.0
    %155 = vmatpush1.msra.mxu0 0.0
    %156 = vmatprep.mubr.f32.mxu0 0.0
    %157 = vmatmul.mubr.f32.gmra.mrb[0].mxu0 %v87
    %v158 = vpop.f32.mrb[0].mxu0
    %v159 = vadd.f32 %v83, %v158
    %v160 = vpop.f32.mrb[0].mxu0
    %161 = vmatprep.mubr.f32.mxu0 0.0
    %162 = vmatmul.mubr.f32.gmra.mrb[0].mxu0 %v90
    %v163 = vpop.f32.mrb[0].mxu0
    %v164 = vadd.f32 %v83, %v163
    %v165 = vpop.f32.mrb[0].mxu0
    %166 = vdwg.mxu0
    %v167 = vmax.f32 %v159, 0.0
    %v168 = vmax.f32 %v164, 0.0
    %v169 = vld [vmem:[%s3] sm:$0x1]
    %v171 = vlaneseq
    %v172 = vshrl.u32 %v171, 7
    %v173 = vsub.s32 0, %v172
    %v174 = vrot.slane %v169, %v173
    %v176 = vmul.f32 %v167, %v174
    %v177 = vmul.f32 %v168, %v174
    %v178 = vsel %vm85, %v176, 0.0
    %179 = vadd.xlane.f32.xlu0 %v178
    %v180 = vpop.xlane.xlu0 %179
    %v181 = vsel %vm85, %v177, 0.0
    %182 = vadd.xlane.f32.xlu0 %v181
    %v183 = vpop.xlane.xlu0 %182
    %s184 = sld [smem:[#allocation2]]
    %v185 = vstv %s184
    %v186 = vadd.f32 %v180, %v185
    %v187 = vadd.f32 %v183, %v185
    %v190 = vlaneseq
    %v191 = vand.u32 %v190, 127
    %v192 = vlaneseq
    %v193 = vshrl.u32 %v192, 7
    %v194 = vsub.s32 %v191, %v193
    %v195 = vrot.slane %v186, %v194
    %v196 = vlaneseq
    %v197 = vshrl.u32 %v196, 7
    %v198 = vsub.s32 %v191, %v197
    %v199 = vrot.slane %v187, %v198
    %vm200 = vcmask 1041409
    %v201 = vsel %vm200, %v199, %v195
    %vm203 = vcmask 58368
    %204 = vst.msk [vmem:[#allocation9] sm:$0x3] %vm203, %v201
    %v205 = vld [vmem:[#allocation8] sm:$0xff]
    %v206 = vld [vmem:[#allocation8 + $0x8] sm:$0xff]
    %v207 = vld [vmem:[#allocation8 + $0x10] sm:$0xff]
    %v208 = vld [vmem:[#allocation8 + $0x18] sm:$0xff]
    %v209 = vld [vmem:[#allocation8 + $0x20] sm:$0xff]
    %v210 = vld [vmem:[#allocation8 + $0x28] sm:$0xff]
    %v211 = vld [vmem:[#allocation8 + $0x30] sm:$0xff]
    %v212 = vld [vmem:[#allocation8 + $0x38] sm:$0xff]
    %v214 = vsel %vm85, %v167, 0
    %v217 = vsel %vm85, %v168, 0
    %219 = vmatprep.subr.mxu0 %v206
    %220 = vmatpush1.msra.mxu0 %v205
    %221 = vmatprep.subr.mxu0 %v208
    %222 = vmatpush1.msra.mxu0 %v207
    %223 = vmatprep.subr.mxu0 %v210
    %224 = vmatpush1.msra.mxu0 %v209
    %225 = vmatprep.subr.mxu0 %v212
    %226 = vmatpush1.msra.mxu0 %v211
    %227 = vmatprep.subr.mxu0 0.0
    %228 = vmatpush1.msra.mxu0 0.0
    %229 = vmatprep.subr.mxu0 0.0
    %230 = vmatpush1.msra.mxu0 0.0
    %231 = vmatprep.subr.mxu0 0.0
    %232 = vmatpush1.msra.mxu0 0.0
    %233 = vmatprep.subr.mxu0 0.0
    %234 = vmatpush1.msra.mxu0 0.0
    %235 = vmatprep.subr.mxu0 0.0
    %236 = vmatpush1.msra.mxu0 0.0
    %237 = vmatprep.subr.mxu0 0.0
    %238 = vmatpush1.msra.mxu0 0.0
    %239 = vmatprep.subr.mxu0 0.0
    %240 = vmatpush1.msra.mxu0 0.0
    %241 = vmatprep.subr.mxu0 0.0
    %242 = vmatpush1.msra.mxu0 0.0
    %243 = vmatprep.subr.mxu0 0.0
    %244 = vmatpush1.msra.mxu0 0.0
    %245 = vmatprep.subr.mxu0 0.0
    %246 = vmatpush1.msra.mxu0 0.0
    %247 = vmatprep.subr.mxu0 0.0
    %248 = vmatpush1.msra.mxu0 0.0
    %249 = vmatprep.subr.mxu0 0.0
    %250 = vmatpush1.msra.mxu0 0.0
    %251 = vmatprep.subr.mxu0 0.0
    %252 = vmatpush1.msra.mxu0 0.0
    %253 = vmatprep.subr.mxu0 0.0
    %254 = vmatpush1.msra.mxu0 0.0
    %255 = vmatprep.subr.mxu0 0.0
    %256 = vmatpush1.msra.mxu0 0.0
    %257 = vmatprep.subr.mxu0 0.0
    %258 = vmatpush1.msra.mxu0 0.0
    %259 = vmatprep.subr.mxu0 0.0
    %260 = vmatpush1.msra.mxu0 0.0
    %261 = vmatprep.subr.mxu0 0.0
    %262 = vmatpush1.msra.mxu0 0.0
    %263 = vmatprep.subr.mxu0 0.0
    %264 = vmatpush1.msra.mxu0 0.0
    %265 = vmatprep.subr.mxu0 0.0
    %266 = vmatpush1.msra.mxu0 0.0
    %267 = vmatprep.subr.mxu0 0.0
    %268 = vmatpush1.msra.mxu0 0.0
    %269 = vmatprep.subr.mxu0 0.0
    %270 = vmatpush1.msra.mxu0 0.0
    %271 = vmatprep.subr.mxu0 0.0
    %272 = vmatpush1.msra.mxu0 0.0
    %273 = vmatprep.subr.mxu0 0.0
    %274 = vmatpush1.msra.mxu0 0.0
    %275 = vmatprep.subr.mxu0 0.0
    %276 = vmatpush1.msra.mxu0 0.0
    %277 = vmatprep.subr.mxu0 0.0
    %278 = vmatpush1.msra.mxu0 0.0
    %279 = vmatprep.subr.mxu0 0.0
    %280 = vmatpush1.msra.mxu0 0.0
    %281 = vmatprep.subr.mxu0 0.0
    %282 = vmatpush1.msra.mxu0 0.0
    %283 = vmatprep.mubr.f32.mxu0 0.0
    %284 = vmatmul.mubr.f32.gmra.mrb[0].mxu0 %v214
    %v285 = vpop.f32.mrb[0].mxu0
    %v286 = vadd.f32 0.0, %v285
    %v287 = vpop.f32.mrb[0].mxu0
    %v288 = vadd.f32 0.0, %v287
    %289 = vmatprep.mubr.f32.mxu0 0.0
    %290 = vmatmul.mubr.f32.gmra.mrb[0].mxu0 %v217
    %v291 = vpop.f32.mrb[0].mxu0
    %v292 = vadd.f32 0.0, %v291
    %v293 = vpop.f32.mrb[0].mxu0
    %v294 = vadd.f32 0.0, %v293
    %295 = vdwg.mxu0
    %v296 = vld [vmem:[%s6] sm:$0x1]
    %v298 = vlaneseq
    %v299 = vshrl.u32 %v298, 7
    %v300 = vsub.s32 0, %v299
    %v301 = vrot.slane %v296, %v300
    %v303 = vadd.f32 %v286, %v301
    %v304 = vadd.f32 %v292, %v301
    %v307 = vrot.slane %v304, 7
    %vm308 = vcmask 1047559
    %v309 = vsel %vm308, %v307, %v303
    %311 = vst [vmem:[#allocation10 - $0x6] sm:$0xc0] %v309
    %v312 = vld [vmem:[%s6 + $0x1] sm:$0x1]
    %v314 = vlaneseq
    %v315 = vshrl.u32 %v314, 7
    %v316 = vsub.s32 0, %v315
    %v317 = vrot.slane %v312, %v316
    %v319 = vadd.f32 %v288, %v317
    %v320 = vadd.f32 %v294, %v317
    %v323 = vrot.slane %v320, 7
    %s326 = scalar_lea.vmem [#allocation10], 2
    %327 = vst [vmem:[%s326 - $0x7] sm:$0x80] %v319
    %328 = vst [vmem:[%s326 + $0x1] sm:$0x1] %v323
    // Predicated region
    $region42: #{tpu_custom_call.1} parent=1 // pred_check
      _
    $region43: #{tpu_custom_call.1} parent=1 // pred_check_branch
      %330 = sbr.rel (0) target = $region45
    $region44: #{tpu_custom_call.1} parent=1 // pred_region
      %s332 = ssub.s32 32, 32
      %333 = vsyncadd [#allocation5], %s332
      %s335 = sshll.u32 [#allocation9], 4
      %s336 = int_to_ptr.vmem [resolvable:$true] %s335
      %338 = dma.vmem_to_hbm [thread:$0]  %s336, 32, %s7, [#allocation5]
    $region45: #{tpu_custom_call.1} parent=1 // pred_fallthru
      _
    // Predicated region
    $region46: #{tpu_custom_call.1} parent=1 // pred_check
      _
    $region47: #{tpu_custom_call.1} parent=1 // pred_check_branch
      %340 = sbr.rel (0) target = $region49
    $region48: #{tpu_custom_call.1} parent=1 // pred_region
      %s342 = ssub.s32 64, 64
      %343 = vsyncadd [#allocation11], %s342
      %s344 = sshll.u32 [#allocation10], 4
      %s345 = int_to_ptr.vmem [resolvable:$true] %s344
      %350 = dma.vmem_to_hbm [thread:$0]  %s345, 64, %s8, [#allocation11], 32, 32, 2
    $region49: #{tpu_custom_call.1} parent=1 // pred_fallthru
      _
    // Predicated region
    $region50: #{tpu_custom_call.1} parent=1 // pred_check
      _
    $region51: #{tpu_custom_call.1} parent=1 // pred_check_branch
      %352 = sbr.rel (0) target = $region53
    $region52: #{tpu_custom_call.1} parent=1 // pred_region
      %353 = dma.done [#allocation5], 32
    $region53: #{tpu_custom_call.1} parent=1 // pred_fallthru
      _
    // Predicated region
    $region54: #{tpu_custom_call.1} parent=1 // pred_check
      _
    $region55: #{tpu_custom_call.1} parent=1 // pred_check_branch
      %355 = sbr.rel (0) target = $region57
    $region56: #{tpu_custom_call.1} parent=1 // pred_region
      %356 = dma.done [#allocation11], 64
    $region57: #{tpu_custom_call.1} parent=1 // pred_fallthru
      _
    %357 = vsyncpa [#allocation4], 1
    %358 = vsyncpa [#allocation7], 1
    %359 = vsyncpa [#allocation5], 1
    %360 = vsyncpa [#allocation11], 1

</llo_original>
